<compile_context>
chip_gen: v7x
topology: tpu7x:2x2x1
jax: 0.10.0
libtpu: 0.0.40
codegen_flags: <defaults>
</compile_context>

<pallas_src>
import jax
import jax.numpy as jnp
from jax.experimental import pallas as pl
from jax.experimental.pallas import tpu as pltpu

_LANES = 128
_SUBLANES = 8
_VMEM_STEP_BUDGET = 12 * 1024 * 1024   # per-step live bytes target (v7x-safe)
_VMEM_LIMIT = 48 * 1024 * 1024         # raised scoped VMEM limit (v5e default: 16 MiB)


def _round_up(x, m):
    return (x + m - 1) // m * m


def conv_relu_pool_kernel(p_ref, w_ref, b_ref, o_ref, hpool_ref):
    """p_ref:     (B_blk, 2*rows_blk, Wo_pad, KH*KW*Cin)  bf16 im2col patches
       w_ref:     (KH*KW*Cin, Cp)                         bf16 weights (Cp lane-padded)
       b_ref:     (1, Cp)                                 f32 bias (padded)
       o_ref:     (B_blk, rows_blk, Wp, Cout)             pooled output (no lane padding)
       hpool_ref: (B_blk*rows_blk, Wo_pad, Cp) f32        scratch for strided W-pool read
    """
    B, R2, Wo_pad, KKC = p_ref.shape
    R = R2 // 2
    Cp = w_ref.shape[1]
    Wp = o_ref.shape[2]
    Cout = o_ref.shape[3]

    # ---- Conv2d: ONE MXU matmul on the dense im2col LHS (bf16 in, f32 acc) ---
    patches = p_ref[...].reshape(B * R2 * Wo_pad, KKC)      # tile-aligned merge
    acc = jnp.dot(patches, w_ref[...],
                  preferred_element_type=jnp.float32)        # (M, Cp) f32

    # ---- bias + ReLU (f32, lane-dense) ---------------------------------------
    acc = jnp.maximum(acc + b_ref[...], 0.0)

    # ---- MaxPool2d(2): pool along H in registers -----------------------------
    conv = acc.reshape(B * R, 2, Wo_pad, Cp)                 # tile-aligned split
    hpooled = jnp.maximum(conv[:, 0], conv[:, 1])            # (B*R, Wo_pad, Cp)

    # ---- pool along W: one full-tile scratch store + two strided loads -------
    hpool_ref[...] = hpooled
    w_even = hpool_ref[:, pl.ds(0, Wp, stride=2), :]         # columns 0, 2, 4, ...
    w_odd = hpool_ref[:, pl.ds(1, Wp, stride=2), :]          # columns 1, 3, 5, ...
    pooled = jnp.maximum(w_even, w_odd)                      # (B*R, Wp, Cp)

    # ---- drop lane padding; only real (Wp, Cout) bytes ever reach HBM --------
    o_ref[...] = pooled[:, :, :Cout].reshape(o_ref.shape).astype(o_ref.dtype)


def conv_block_forward(x_nchw, w_oihw, b, *, stride=1, padding=0):
    """ConvBlock.forward: Conv2d(stride, padding) -> ReLU -> MaxPool2d(2)."""
    # TODO(synk): stride > 1 would need a strided im2col; module default is 1.
    assert stride == 1, "only stride=1 (the nn.Conv2d default) is implemented"
    N, Cin, H, W = x_nchw.shape
    Cout, _, KH, KW = w_oihw.shape

    Ho = (H + 2 * padding - KH) // stride + 1                # conv output H
    Wo = (W + 2 * padding - KW) // stride + 1                # conv output W
    Hp, Wp = Ho // 2, Wo // 2                                # pooled output
    KKC = KH * KW * Cin

    # Lane-padded compute channels (only inside the kernel, never in HBM).
    Cp = _round_up(max(Cout, _LANES), _LANES)
    if Cp > _LANES:                                          # v6e/v7x MXU is 256 wide
        Cp = _round_up(Cp, 2 * _LANES)
    Wo_pad = _round_up(Wo, _SUBLANES)                        # sublane-aligned conv width
    Wx_pad = Wo_pad + KW - 1                                 # padded input width
    compute_dtype = jnp.bfloat16                             # MXU-native operands

    # ---- block sizing: bound per-step live VMEM (v7x has only 64 MiB) --------
    def _vmem_bytes(b_blk, r_blk):
        patches_b = b_blk * 2 * r_blk * Wo_pad * KKC * 2     # bf16, double-buffered
        out_b = b_blk * r_blk * Wp * Cout * 4                # f32, double-buffered
        w_b = KKC * Cp * 2
        bias_b = Cp * 4
        scratch_b = b_blk * r_blk * Wo_pad * Cp * 4          # hpool scratch
        acc_b = b_blk * 2 * r_blk * Wo_pad * Cp * 4          # f32 conv accumulator
        return 2 * (patches_b + out_b + w_b + bias_b) + scratch_b + acc_b

    rows_blk = max(Hp, 1)
    while rows_blk > 1 and _vmem_bytes(1, rows_blk) > _VMEM_STEP_BUDGET:
        rows_blk = -(-rows_blk // 2)
    nrb = -(-Hp // rows_blk)
    Hp_pad = nrb * rows_blk

    # Batch several images per step only if >=2 parallel grid steps remain
    # (v7x shards the parallel grid across its 2 TensorCores).
    b_blk = 1
    for cand in range(min(N, 8), 1, -1):
        if N % cand:
            continue
        if (N // cand) * nrb < 2:
            continue
        if _vmem_bytes(cand, rows_blk) <= _VMEM_STEP_BUDGET:
            b_blk = cand
            break

    # ---- wrapper glue (XLA): layout + dense im2col, in bf16 ------------------
    x = jnp.transpose(x_nchw, (0, 2, 3, 1)).astype(compute_dtype)   # NCHW -> NHWC
    pad_w_hi = padding + (Wx_pad - (W + 2 * padding))
    x = jnp.pad(x, ((0, 0), (padding, padding), (padding, pad_w_hi), (0, 0)))

    # Dense im2col LHS: (N, 2*Hp, Wo_pad, KH*KW*Cin); trailing odd conv row
    # (floor pooling) is dropped here.  Feature order (kh, kw, c) matches the
    # weight reshape below.
    cols = [x[:, kh:kh + 2 * Hp, kw:kw + Wo_pad, :]
            for kh in range(KH) for kw in range(KW)]
    patches = jnp.concatenate(cols, axis=-1)
    if Hp_pad != Hp:
        patches = jnp.pad(patches, ((0, 0), (0, 2 * (Hp_pad - Hp)), (0, 0), (0, 0)))

    # Weights: OIHW -> (KH*KW*Cin, Cout), bf16, lane-pad Cout -> Cp.
    w = jnp.transpose(w_oihw, (2, 3, 1, 0)).reshape(KKC, Cout).astype(compute_dtype)
    w = jnp.pad(w, ((0, 0), (0, Cp - Cout)))
    b2 = jnp.pad(b.astype(jnp.float32).reshape(1, Cout), ((0, 0), (0, Cp - Cout)))

    flops = 2 * N * (2 * Hp_pad) * Wo_pad * KKC * Cp
    bytes_accessed = (patches.size * patches.dtype.itemsize
                      + w.size * w.dtype.itemsize + b2.size * 4
                      + N * Hp_pad * Wp * Cout * 4)

    out_nhwc = pl.pallas_call(
        conv_relu_pool_kernel,
        out_shape=jax.ShapeDtypeStruct((N, Hp_pad, Wp, Cout), jnp.float32),
        grid=(N // b_blk, nrb),
        in_specs=[
            pl.BlockSpec((b_blk, 2 * rows_blk, Wo_pad, KKC),
                         lambda n, r: (n, r, 0, 0)),
            pl.BlockSpec((KKC, Cp), lambda n, r: (0, 0)),
            pl.BlockSpec((1, Cp), lambda n, r: (0, 0)),
        ],
        out_specs=pl.BlockSpec((b_blk, rows_blk, Wp, Cout),
                               lambda n, r: (n, r, 0, 0)),
        scratch_shapes=[pltpu.VMEM((b_blk * rows_blk, Wo_pad, Cp), jnp.float32)],
        compiler_params=pltpu.CompilerParams(
            dimension_semantics=("parallel", "parallel"),
            vmem_limit_bytes=_VMEM_LIMIT),
        cost_estimate=pl.CostEstimate(flops=flops, transcendentals=0,
                                      bytes_accessed=bytes_accessed),
    )(patches, w, b2)

    out = out_nhwc[:, :Hp]                                   # drop row padding (if any)
    return jnp.transpose(out, (0, 3, 1, 2))                  # NHWC -> NCHW


def ref_forward(x_nchw, w_oihw, b, *, padding=0):
    """Pure-JAX reference matching torch Conv2d + ReLU + MaxPool2d(2).

    Conv inputs are rounded to bf16 (accumulation in f32), matching the
    kernel's MXU numerics, so a tight tolerance can be asserted.
    """
    xb = x_nchw.astype(jnp.bfloat16).astype(jnp.float32)
    wb = w_oihw.astype(jnp.bfloat16).astype(jnp.float32)
    out = jax.lax.conv_general_dilated(
        xb, wb, window_strides=(1, 1),
        padding=[(padding, padding), (padding, padding)],
        dimension_numbers=("NCHW", "OIHW", "NCHW"))
    out = out + b.reshape(1, -1, 1, 1)
    out = jnp.maximum(out, 0.0)
    out = jax.lax.reduce_window(
        out, -jnp.inf, jax.lax.max,
        window_dimensions=(1, 1, 2, 2), window_strides=(1, 1, 2, 2),
        padding="VALID")
    return out


if __name__ == "__main__":
    key = jax.random.PRNGKey(0)
    kx, kw, kb = jax.random.split(key, 3)

    # ConvBlock(in_channels=4, out_channels=8, kernel_size=3)  (stride=1, padding=0)
    N, Cin, H, W = 2, 4, 16, 16
    Cout, K = 8, 3

    x = jax.random.normal(kx, (N, Cin, H, W), jnp.float32)
    weight = jax.random.normal(kw, (Cout, Cin, K, K), jnp.float32) * 0.1
    bias = jax.random.normal(kb, (Cout,), jnp.float32) * 0.1

    fwd = jax.jit(conv_block_forward)
    out = jax.block_until_ready(fwd(x, weight, bias))

    ref = ref_forward(x, weight, bias)
    assert out.shape == (N, Cout, (H - K + 1) // 2, (W - K + 1) // 2), out.shape
    max_err = float(jnp.max(jnp.abs(out - ref)))
    assert jnp.allclose(out, ref, atol=2e-2, rtol=2e-2), max_err

    print("KERNEL_OK")
</pallas_src>

<mosaic_0001>
module attributes {stable_mosaic.version = 11 : i64} {
  func.func @conv_relu_pool_kernel(%arg0: i32, %arg1: i32, %arg2: memref<1x14x16x36xbf16, #tpu.memory_space<vmem>>, %arg3: memref<36x128xbf16, #tpu.memory_space<vmem>>, %arg4: memref<1x128xf32, #tpu.memory_space<vmem>>, %arg5: memref<1x7x7x8xf32, #tpu.memory_space<vmem>>, %arg6: memref<7x16x128xf32, #tpu.memory_space<vmem>>) attributes {dimension_semantics = [#tpu.dimension_semantics<parallel>, #tpu.dimension_semantics<parallel>], iteration_bounds = array<i64: 2, 1>, scalar_prefetch = 0 : i64, scratch_operands = 1 : i64, tpu.core_type = #tpu.core_type<tc>, window_params = [{transform_indices = @transform_0, window_bounds = array<i64: 1, 14, 16, 36>}, {pipeline_mode = #tpu.pipeline_mode<synchronous>, transform_indices = @transform_1, window_bounds = array<i64: 36, 128>}, {pipeline_mode = #tpu.pipeline_mode<synchronous>, transform_indices = @transform_2, window_bounds = array<i64: 1, 128>}, {transform_indices = @transform_3, window_bounds = array<i64: 1, 7, 7, 8>}]} {
    %c0 = arith.constant 0 : index
    %c0_0 = arith.constant 0 : index
    %c0_1 = arith.constant 0 : index
    %c0_2 = arith.constant 0 : index
    %0 = vector.load %arg2[%c0, %c0_0, %c0_1, %c0_2] : memref<1x14x16x36xbf16, #tpu.memory_space<vmem>>, vector<1x14x16x36xbf16>
    %1 = vector.shape_cast %0 : vector<1x14x16x36xbf16> to vector<224x36xbf16>
    %c0_3 = arith.constant 0 : index
    %c0_4 = arith.constant 0 : index
    %2 = vector.load %arg3[%c0_3, %c0_4] : memref<36x128xbf16, #tpu.memory_space<vmem>>, vector<36x128xbf16>
    %cst = arith.constant dense<0.000000e+00> : vector<224x128xf32>
    %3 = tpu.matmul %1, %2, %cst {dimension_numbers = #tpu.dot_dimension_numbers<[1], [0], [0], [1], [0, 0, 1, 1], [], []>} : vector<224x36xbf16>, vector<36x128xbf16>, vector<224x128xf32> -> vector<224x128xf32>
    %c0_5 = arith.constant 0 : index
    %c0_6 = arith.constant 0 : index
    %4 = vector.load %arg4[%c0_5, %c0_6] : memref<1x128xf32, #tpu.memory_space<vmem>>, vector<1x128xf32>
    %5 = vector.broadcast %4 : vector<1x128xf32> to vector<224x128xf32>
    %6 = arith.addf %3, %5 : vector<224x128xf32>
    %cst_7 = arith.constant 0.000000e+00 : f32
    %7 = vector.broadcast %cst_7 : f32 to vector<224x128xf32>
    %8 = arith.maximumf %6, %7 : vector<224x128xf32>
    %9 = vector.shape_cast %8 : vector<224x128xf32> to vector<7x2x16x128xf32>
    %10 = vector.extract_strided_slice %9 {offsets = [0, 0, 0, 0], sizes = [7, 1, 16, 128], strides = [1, 1, 1, 1]} : vector<7x2x16x128xf32> to vector<7x1x16x128xf32>
    %11 = vector.shape_cast %10 : vector<7x1x16x128xf32> to vector<7x16x128xf32>
    %12 = vector.extract_strided_slice %9 {offsets = [0, 1, 0, 0], sizes = [7, 1, 16, 128], strides = [1, 1, 1, 1]} : vector<7x2x16x128xf32> to vector<7x1x16x128xf32>
    %13 = vector.shape_cast %12 : vector<7x1x16x128xf32> to vector<7x16x128xf32>
    %14 = arith.maximumf %11, %13 : vector<7x16x128xf32>
    %c0_8 = arith.constant 0 : index
    %c0_9 = arith.constant 0 : index
    %c0_10 = arith.constant 0 : index
    %15 = vector.load %arg6[%c0_8, %c0_9, %c0_10] : memref<7x16x128xf32, #tpu.memory_space<vmem>>, vector<7x16x128xf32>
    tpu.vector_store %arg6[%c0_8, %c0_9, %c0_10], %14 {strides = array<i32>} : memref<7x16x128xf32, #tpu.memory_space<vmem>>, vector<7x16x128xf32>,
    %c0_11 = arith.constant 0 : index
    %c0_12 = arith.constant 0 : index
    %c0_13 = arith.constant 0 : index
    %16 = tpu.strided_load %arg6[%c0_11, %c0_12, %c0_13] {strides = array<i32: 1, 2, 1>} : memref<7x16x128xf32, #tpu.memory_space<vmem>>, vector<7x7x128xf32>
    %c0_14 = arith.constant 0 : index
    %c1 = arith.constant 1 : index
    %c0_15 = arith.constant 0 : index
    %17 = tpu.strided_load %arg6[%c0_14, %c1, %c0_15] {strides = array<i32: 1, 2, 1>} : memref<7x16x128xf32, #tpu.memory_space<vmem>>, vector<7x7x128xf32>
    %18 = arith.maximumf %16, %17 : vector<7x7x128xf32>
    %19 = vector.extract_strided_slice %18 {offsets = [0, 0, 0], sizes = [7, 7, 8], strides = [1, 1, 1]} : vector<7x7x128xf32> to vector<7x7x8xf32>
    %20 = vector.shape_cast %19 : vector<7x7x8xf32> to vector<1x7x7x8xf32>
    %c0_16 = arith.constant 0 : index
    %c0_17 = arith.constant 0 : index
    %c0_18 = arith.constant 0 : index
    %c0_19 = arith.constant 0 : index
    %21 = vector.load %arg5[%c0_16, %c0_17, %c0_18, %c0_19] : memref<1x7x7x8xf32, #tpu.memory_space<vmem>>, vector<1x7x7x8xf32>
    tpu.vector_store %arg5[%c0_16, %c0_17, %c0_18, %c0_19], %20 {strides = array<i32>} : memref<1x7x7x8xf32, #tpu.memory_space<vmem>>, vector<1x7x7x8xf32>,
    return
  }
  func.func @transform_0(%arg0: i32, %arg1: i32) -> (i32, i32, i32, i32) {
    %c0_i32 = arith.constant 0 : i32
    %c0_i32_0 = arith.constant 0 : i32
    %c0_i32_1 = arith.constant 0 : i32
    return %arg0, %arg1, %c0_i32, %c0_i32_0 : i32, i32, i32, i32
  }
  func.func @transform_1(%arg0: i32, %arg1: i32) -> (i32, i32) {
    %c0_i32 = arith.constant 0 : i32
    %c0_i32_0 = arith.constant 0 : i32
    %c0_i32_1 = arith.constant 0 : i32
    return %c0_i32, %c0_i32_0 : i32, i32
  }
  func.func @transform_2(%arg0: i32, %arg1: i32) -> (i32, i32) {
    %c0_i32 = arith.constant 0 : i32
    %c0_i32_0 = arith.constant 0 : i32
    %c0_i32_1 = arith.constant 0 : i32
    return %c0_i32, %c0_i32_0 : i32, i32
  }
  func.func @transform_3(%arg0: i32, %arg1: i32) -> (i32, i32, i32, i32) {
    %c0_i32 = arith.constant 0 : i32
    %c0_i32_0 = arith.constant 0 : i32
    %c0_i32_1 = arith.constant 0 : i32
    return %arg0, %arg1, %c0_i32, %c0_i32_0 : i32, i32, i32, i32
  }
}

</mosaic_0001>

<llo_original>
// kernel: conv_block_forward.1
$region0: #{conv_block_forward.1}
  #allocation0 [shape = 'u32[]', space=smem, size = 0x4, offset = 0x4, fixed_abs, tag = 'smem constant byte address 0x4 - core index']
  #allocation1 [shape = 'u32[144,128]{1,0:T(1,128)}', space=vmem, size = 0x12000, scoped, tag = 'internal scratch']
  #allocation2 [shape = 'f32[7,16,128]{2,1,0:T(8,128)}', space=vmem, size = 0xe000, scoped, tag = 'scratch operand']
  %s0 = inlined_call_operand.vmem [shape: bf16[2,14,16,36], index: 0, kind: input, shape index: {}]
  %s1 = inlined_call_operand.vmem [shape: bf16[36,128], index: 1, kind: input, shape index: {}]
  %s2 = inlined_call_operand.vmem [shape: f32[1,128], index: 2, kind: input, shape index: {}]
  %s3 = inlined_call_operand.vmem [shape: f32[2,7,7,8], index: 3, kind: output, shape index: {}]
  %s4 = sld [smem:[#allocation0]]
  $region45: #{conv_block_forward.1} parent=0
    _
  %s6 = ssub.s32 1, %s4
  %s7 = scalar_select 0, %s6, %s4
  loop: start=0, step=1, limit=4
  $region2: #{conv_block_forward.1} parent=0 // loop_pre_header
    _
  $region3: #{conv_block_forward.1} parent=0 // loop_header
    %s9 = sphi 0, %s13
    %p10 = scmp.ge.s32.totalorder %s9, 4
    %s16 = sphi 0, %s28
    %s17 = sphi 0, %s24
    %s18 = sphi 0, %s16
    %s19 = sphi 0, %s17
    %s20 = sphi 0, %s18
    %s21 = sphi 0, %s19
    %s33 = sphi 0, %s35
    %s36 = sphi 0, %s33
    %s37 = sphi 0, %s36
    %s53 = sphi 0, %s37
    %s57 = sphi 0, %s57
    %s59 = sphi 0, %s57
    %s60 = sphi 0, %s59
    %s74 = sphi 0, %s60
    %s78 = sphi 0, %s78
    %s80 = sphi 0, %s78
    %s81 = sphi 0, %s80
    %s95 = sphi 0, %s81
    %s103 = sphi 0, %s105
    %s106 = sphi 0, %s103
    %s107 = sphi 0, %s106
    %s123 = sphi 0, %s107
  $region4: #{conv_block_forward.1} parent=0 // loop_header_branch
    %12 = sbr.rel (%p10) target = $region8
  $region5: #{conv_block_forward.1} parent=0 // loop_body
    %s14 = ssub.s32 %s9, 1
    %s15 = ssub.s32 %s9, 2
    %s22 = sadd.s32 1, %s17
    %p23 = scmp.ge.s32.totalorder %s22, 1
    %s24 = scalar_select %p23, 0, %s22
    %s25 = sadd.s32 1, %s16
    %s26 = scalar_select %p23, %s25, %s16
    %p27 = scmp.ge.s32.totalorder %s26, 2
    %s28 = scalar_select %p27, 0, %s26
    %s29 = ssub.s32 %s16, %s28
    %s30 = ssub.s32 %s17, %s24
    %s31 = sor.u32 %s29, %s30
    %p32 = scmp.eq.s32.totalorder %s31, 0
    %s34 = sadd.s32 %s33, 1
    %s35 = scalar_select %p32, %s33, %s34
    %p38 = pneg %p32
    %p39 = scmp.eq.s32.totalorder %s9, 1
    %p40 = por %p38, %p39
    %p41 = scmp.ne.s32.totalorder %s33, %s36
    %p42 = scmp.eq.s32.totalorder %s9, 0
    %p43 = por %p41, %p42
    %p44 = scmp.ne.s32.totalorder %s33, %s36
    %p45 = scmp.eq.s32.totalorder %s14, 1
    %p46 = por %p44, %p45
    %p47 = scmp.ne.s32.totalorder %s36, %s37
    %p48 = scmp.eq.s32.totalorder %s14, 0
    %p49 = por %p47, %p48
    %p50 = scmp.ne.s32.totalorder %s36, %s37
    %p51 = scmp.eq.s32.totalorder %s15, 1
    %p52 = por %p50, %p51
    %p54 = scmp.ne.s32.totalorder %s37, %s53
    %p55 = scmp.eq.s32.totalorder %s15, 0
    %p56 = por %p54, %p55
    %s58 = sadd.s32 %s57, 1
    %p61 = scmp.eq.s32.totalorder %s9, 1
    %p62 = scmp.ne.s32.totalorder %s57, %s59
    %p63 = scmp.eq.s32.totalorder %s9, 0
    %p64 = por %p62, %p63
    %p65 = scmp.ne.s32.totalorder %s57, %s59
    %p66 = scmp.eq.s32.totalorder %s14, 1
    %p67 = por %p65, %p66
    %p68 = scmp.ne.s32.totalorder %s59, %s60
    %p69 = scmp.eq.s32.totalorder %s14, 0
    %p70 = por %p68, %p69
    %p71 = scmp.ne.s32.totalorder %s59, %s60
    %p72 = scmp.eq.s32.totalorder %s15, 1
    %p73 = por %p71, %p72
    %p75 = scmp.ne.s32.totalorder %s60, %s74
    %p76 = scmp.eq.s32.totalorder %s15, 0
    %p77 = por %p75, %p76
    %s79 = sadd.s32 %s78, 1
    %p82 = scmp.eq.s32.totalorder %s9, 1
    %p83 = scmp.ne.s32.totalorder %s78, %s80
    %p84 = scmp.eq.s32.totalorder %s9, 0
    %p85 = por %p83, %p84
    %p86 = scmp.ne.s32.totalorder %s78, %s80
    %p87 = scmp.eq.s32.totalorder %s14, 1
    %p88 = por %p86, %p87
    %p89 = scmp.ne.s32.totalorder %s80, %s81
    %p90 = scmp.eq.s32.totalorder %s14, 0
    %p91 = por %p89, %p90
    %p92 = scmp.ne.s32.totalorder %s80, %s81
    %p93 = scmp.eq.s32.totalorder %s15, 1
    %p94 = por %p92, %p93
    %p96 = scmp.ne.s32.totalorder %s81, %s95
    %p97 = scmp.eq.s32.totalorder %s15, 0
    %p98 = por %p96, %p97
    %s99 = ssub.s32 %s16, %s28
    %s100 = ssub.s32 %s17, %s24
    %s101 = sor.u32 %s99, %s100
    %p102 = scmp.eq.s32.totalorder %s101, 0
    %s104 = sadd.s32 %s103, 1
    %s105 = scalar_select %p102, %s103, %s104
    %p108 = pneg %p102
    %p109 = scmp.eq.s32.totalorder %s9, 1
    %p110 = por %p108, %p109
    %p111 = scmp.ne.s32.totalorder %s103, %s106
    %p112 = scmp.eq.s32.totalorder %s9, 0
    %p113 = por %p111, %p112
    %p114 = scmp.ne.s32.totalorder %s103, %s106
    %p115 = scmp.eq.s32.totalorder %s14, 1
    %p116 = por %p114, %p115
    %p117 = scmp.ne.s32.totalorder %s106, %s107
    %p118 = scmp.eq.s32.totalorder %s14, 0
    %p119 = por %p117, %p118
    %p120 = scmp.ne.s32.totalorder %s106, %s107
    %p121 = scmp.eq.s32.totalorder %s15, 1
    %p122 = por %p120, %p121
    %p124 = scmp.ne.s32.totalorder %s107, %s123
    %p125 = scmp.eq.s32.totalorder %s15, 0
    %p126 = por %p124, %p125
    %p127 = scmp.le.s32.totalorder 1, %s9
    %p128 = scmp.lt.s32.totalorder %s9, 3
    %p129 = pnand %p127, %p128
    %p130 = pneg %p129
    // Predicated region
    $region9: #{conv_block_forward.1} parent=5 // pred_check
      _
    $region10: #{conv_block_forward.1} parent=5 // pred_check_branch
      %132 = sbr.rel (%p129) target = $region12
    $region11: #{conv_block_forward.1} parent=5 // pred_region
      %s133 = ssub.s32 %s9, 1
      // Predicated region
      $region13: #{conv_block_forward.1} parent=11 // pred_check
        %p134 = pneg %p70
      $region14: #{conv_block_forward.1} parent=11 // pred_check_branch
        %136 = sbr.rel (%p134) target = $region16
      $region15: #{conv_block_forward.1} parent=11 // pred_region
        _
      $region16: #{conv_block_forward.1} parent=11 // pred_fallthru
        _
      // Predicated region
      $region17: #{conv_block_forward.1} parent=11 // pred_check
        %p137 = pneg %p91
      $region18: #{conv_block_forward.1} parent=11 // pred_check_branch
        %139 = sbr.rel (%p137) target = $region20
      $region19: #{conv_block_forward.1} parent=11 // pred_region
        _
      $region20: #{conv_block_forward.1} parent=11 // pred_fallthru
        _
    $region12: #{conv_block_forward.1} parent=5 // pred_fallthru
      _
    %p140 = scmp.lt.s32.totalorder %s9, 2
    // Predicated region
    $region21: #{conv_block_forward.1} parent=5 // pred_check
      %p141 = pneg %p140
    $region22: #{conv_block_forward.1} parent=5 // pred_check_branch
      %143 = sbr.rel (%p141) target = $region24
    $region23: #{conv_block_forward.1} parent=5 // pred_region
      // Predicated region
      $region25: #{conv_block_forward.1} parent=23 // pred_check
        %p144 = pneg %p43
      $region26: #{conv_block_forward.1} parent=23 // pred_check_branch
        %146 = sbr.rel (%p144) target = $region28
      $region27: #{conv_block_forward.1} parent=23 // pred_region
        %s147 = smul.u32 14, %s17
        %p148 = scmp.lt.s32.totalorder %s16, 1
        %s149 = scalar_select %p148, %s16, 1
        %p150 = scmp.lt.s32.totalorder %s147, 13
        %s151 = scalar_select %p150, %s147, 13
        %s152 = smul.addr %s151, 2
        %s153 = smul.addr %s149, 28
        %s154 = sadd.s32 %s152, %s153
        %s155 = smul.addr %s154, 4
        %s156 = scalar_lea.vmem %s0, %s155
        %s157 = smul.u32 14, %s17
      $region28: #{conv_block_forward.1} parent=23 // pred_fallthru
        _
    $region24: #{conv_block_forward.1} parent=5 // pred_fallthru
      _
    %p158 = scmp.le.s32.totalorder 1, %s9
    %p159 = scmp.lt.s32.totalorder %s9, 3
    %p160 = pnand %p158, %p159
    %p161 = pneg %p160
    // Predicated region
    $region29: #{conv_block_forward.1} parent=5 // pred_check
      _
    $region30: #{conv_block_forward.1} parent=5 // pred_check_branch
      %163 = sbr.rel (%p160) target = $region32
    $region31: #{conv_block_forward.1} parent=5 // pred_region
      %s164 = ssub.s32 %s9, 1
      %s165 = smul.u32 14, %s19
      %p166 = scmp.lt.s32.totalorder %s18, 1
      %s167 = scalar_select %p166, %s18, 1
      %p168 = scmp.lt.s32.totalorder %s165, 13
      %s169 = scalar_select %p168, %s165, 13
      %s170 = smul.addr %s169, 2
      %s171 = smul.addr %s167, 28
      %s172 = sadd.s32 %s170, %s171
      %s173 = smul.addr %s172, 4
      %s174 = scalar_lea.vmem %s0, %s173
      %p175 = pneg %p49
      %p176 = pneg %p46
      %p177 = pneg %p70
      %p178 = pneg %p67
      %p179 = pneg %p91
      %p180 = pneg %p88
      %p181 = pneg %p119
      %p182 = pneg %p116
      %s183 = smul.u32 7, %s19
      %p184 = scmp.lt.s32.totalorder %s18, 1
      %s185 = scalar_select %p184, %s18, 1
      %p186 = scmp.lt.s32.totalorder %s183, 6
      %s187 = scalar_select %p186, %s183, 6
      %s188 = smul.addr %s185, 7
      %s189 = sadd.s32 %s187, %s188
      %s190 = smul.addr %s189, 8
      %s191 = scalar_lea.vmem %s3, %s190
      %s192 = smul.u32 14, %s19
      %p193 = scmp.lt.s32.totalorder %s18, 1
      %s194 = scalar_select %p193, %s18, 1
      %p195 = scmp.lt.s32.totalorder %s192, 13
      %s196 = scalar_select %p195, %s192, 13
      %s197 = smul.addr %s196, 2
      %s198 = smul.addr %s194, 28
      %s199 = sadd.s32 %s197, %s198
      %s200 = smul.addr %s199, 4
      %s201 = scalar_lea.vmem %s0, %s200
      %s202 = smul.u32 14, %s19
      %s203 = smul.u32 7, %s19
      %p204 = scmp.lt.s32.totalorder %s18, 1
      %s205 = scalar_select %p204, %s18, 1
      %p206 = scmp.lt.s32.totalorder %s203, 6
      %s207 = scalar_select %p206, %s203, 6
      %s208 = smul.addr %s205, 7
      %s209 = sadd.s32 %s207, %s208
      %s210 = smul.addr %s209, 8
      %s211 = scalar_lea.vmem %s3, %s210
      %s212 = smul.u32 7, %s19
      %v214 = vld [vmem:[%s201] sm:$0xf]
      %v215 = vld [vmem:[%s201 + $0x4] sm:$0xf]
      %v216 = vld [vmem:[%s201 + $0x8] sm:$0xf]
      %v217 = vld [vmem:[%s201 + $0xc] sm:$0xf]
      %v218 = vld [vmem:[%s201 + $0x10] sm:$0xf]
      %v219 = vld [vmem:[%s201 + $0x14] sm:$0xf]
      %v220 = vld [vmem:[%s201 + $0x18] sm:$0xf]
      %v221 = vld [vmem:[%s201 + $0x1c] sm:$0xf]
      %v222 = vld [vmem:[%s201 + $0x20] sm:$0xf]
      %v223 = vld [vmem:[%s201 + $0x24] sm:$0xf]
      %v224 = vld [vmem:[%s201 + $0x28] sm:$0xf]
      %v225 = vld [vmem:[%s201 + $0x2c] sm:$0xf]
      %v226 = vld [vmem:[%s201 + $0x30] sm:$0xf]
      %v227 = vld [vmem:[%s201 + $0x34] sm:$0xf]
      %v228 = vld [vmem:[%s201 + $0x38] sm:$0xf]
      %v229 = vld [vmem:[%s201 + $0x3c] sm:$0xf]
      %v230 = vld [vmem:[%s201 + $0x40] sm:$0xf]
      %v231 = vld [vmem:[%s201 + $0x44] sm:$0xf]
      %v232 = vld [vmem:[%s201 + $0x48] sm:$0xf]
      %v233 = vld [vmem:[%s201 + $0x4c] sm:$0xf]
      %v234 = vld [vmem:[%s201 + $0x50] sm:$0xf]
      %v235 = vld [vmem:[%s201 + $0x54] sm:$0xf]
      %v236 = vld [vmem:[%s201 + $0x58] sm:$0xf]
      %v237 = vld [vmem:[%s201 + $0x5c] sm:$0xf]
      %v238 = vld [vmem:[%s201 + $0x60] sm:$0xf]
      %v239 = vld [vmem:[%s201 + $0x64] sm:$0xf]
      %v240 = vld [vmem:[%s201 + $0x68] sm:$0xf]
      %v241 = vld [vmem:[%s201 + $0x6c] sm:$0xf]
      %v242 = vld [vmem:[%s1] sm:$0xf]
      %v243 = vld [vmem:[%s1 + $0x4] sm:$0xf]
      %v244 = vld [vmem:[%s1 + $0x8] sm:$0xf]
      %v245 = vld [vmem:[%s1 + $0xc] sm:$0xf]
      %v246 = vld [vmem:[%s1 + $0x10] sm:$0x3]
      %v247 = vld [vmem:[%s2] sm:$0x1]
      %v249 = vlaneseq
      %v250 = vshrl.u32 %v249, 7
      %v251 = vsub.s32 0, %v250
      %v252 = vrot.slane %v247, %v251
      %v282 = vunpack.c.l.b16 %v214
      %v283 = vunpack.c.l.b16 %v215
      %v284 = vunpack.c.l.b16 %v216
      %v285 = vunpack.c.l.b16 %v217
      %v286 = vunpack.c.l.b16 %v218
      %v287 = vunpack.c.l.b16 %v219
      %v288 = vunpack.c.l.b16 %v220
      %v289 = vunpack.c.l.b16 %v221
      %v290 = vunpack.c.l.b16 %v222
      %v291 = vunpack.c.l.b16 %v223
      %v292 = vunpack.c.l.b16 %v224
      %v293 = vunpack.c.l.b16 %v225
      %v294 = vunpack.c.l.b16 %v226
      %v295 = vunpack.c.l.b16 %v227
      %v296 = vunpack.c.l.b16 %v228
      %v297 = vunpack.c.l.b16 %v229
      %v298 = vunpack.c.l.b16 %v230
      %v299 = vunpack.c.l.b16 %v231
      %v300 = vunpack.c.l.b16 %v232
      %v301 = vunpack.c.l.b16 %v233
      %v302 = vunpack.c.l.b16 %v234
      %v303 = vunpack.c.l.b16 %v235
      %v304 = vunpack.c.l.b16 %v236
      %v305 = vunpack.c.l.b16 %v237
      %v306 = vunpack.c.l.b16 %v238
      %v307 = vunpack.c.l.b16 %v239
      %v308 = vunpack.c.l.b16 %v240
      %v309 = vunpack.c.l.b16 %v241
      %v310 = vpack.c.b16 %v283, %v282
      %v311 = vpack.c.b16 %v285, %v284
      %v312 = vpack.c.b16 %v287, %v286
      %v313 = vpack.c.b16 %v289, %v288
      %v314 = vpack.c.b16 %v291, %v290
      %v315 = vpack.c.b16 %v293, %v292
      %v316 = vpack.c.b16 %v295, %v294
      %v317 = vpack.c.b16 %v297, %v296
      %v318 = vpack.c.b16 %v299, %v298
      %v319 = vpack.c.b16 %v301, %v300
      %v320 = vpack.c.b16 %v303, %v302
      %v321 = vpack.c.b16 %v305, %v304
      %v322 = vpack.c.b16 %v307, %v306
      %v323 = vpack.c.b16 %v309, %v308
      %v329 = vunpack.c.l.b16 %v242
      %v330 = vunpack.c.l.b16 %v243
      %v331 = vunpack.c.l.b16 %v244
      %v332 = vunpack.c.l.b16 %v245
      %v333 = vunpack.c.l.b16 %v246
      %v334 = vpack.c.b16 %v330, %v329
      %v335 = vpack.c.b16 %v332, %v331
      %v336 = vpack.c.b16 %v333, %v333
      %vm339 = vcmask 293888
      %v341 = vsel %vm339, %v310, 0
      %v344 = vsel %vm339, %v311, 0
      %v347 = vsel %vm339, %v312, 0
      %v350 = vsel %vm339, %v313, 0
      %v353 = vsel %vm339, %v314, 0
      %v356 = vsel %vm339, %v315, 0
      %v359 = vsel %vm339, %v316, 0
      %v362 = vsel %vm339, %v317, 0
      %v365 = vsel %vm339, %v318, 0
      %v368 = vsel %vm339, %v319, 0
      %v371 = vsel %vm339, %v320, 0
      %v374 = vsel %vm339, %v321, 0
      %v377 = vsel %vm339, %v322, 0
      %v380 = vsel %vm339, %v323, 0
      %vm382 = vcmask 1041408
      %v384 = vsel %vm382, %v336, 0
      %386 = vmatprep.subr.bf16.mxu0 0
      %387 = vmatpush1.bf16.msra.mxu0 %v334
      %388 = vmatprep.subr.bf16.mxu0 0
      %389 = vmatpush1.bf16.msra.mxu0 %v335
      %390 = vmatprep.subr.bf16.mxu0 0
      %391 = vmatpush1.bf16.msra.mxu0 %v384
      %392 = vmatprep.subr.bf16.mxu0 0
      %393 = vmatpush1.bf16.msra.mxu0 0
      %394 = vmatprep.subr.bf16.mxu0 0
      %395 = vmatpush1.bf16.msra.mxu0 0
      %396 = vmatprep.subr.bf16.mxu0 0
      %397 = vmatpush1.bf16.msra.mxu0 0
      %398 = vmatprep.subr.bf16.mxu0 0
      %399 = vmatpush1.bf16.msra.mxu0 0
      %400 = vmatprep.subr.bf16.mxu0 0
      %401 = vmatpush1.bf16.msra.mxu0 0
      %402 = vmatprep.subr.bf16.mxu0 0
      %403 = vmatpush1.bf16.msra.mxu0 0
      %404 = vmatprep.subr.bf16.mxu0 0
      %405 = vmatpush1.bf16.msra.mxu0 0
      %406 = vmatprep.subr.bf16.mxu0 0
      %407 = vmatpush1.bf16.msra.mxu0 0
      %408 = vmatprep.subr.bf16.mxu0 0
      %409 = vmatpush1.bf16.msra.mxu0 0
      %410 = vmatprep.subr.bf16.mxu0 0
      %411 = vmatpush1.bf16.msra.mxu0 0
      %412 = vmatprep.subr.bf16.mxu0 0
      %413 = vmatpush1.bf16.msra.mxu0 0
      %414 = vmatprep.subr.bf16.mxu0 0
      %415 = vmatpush1.bf16.msra.mxu0 0
      %416 = vmatprep.subr.bf16.mxu0 0
      %417 = vmatpush1.bf16.msra.mxu0 0
      %418 = vmatprep.mubr.bf16.mxu0 0
      %419 = vmatmul.mubr.bf16.gmra.mrb[0].mxu0 %v341
      %v420 = vpop.f32.mrb[0].mxu0
      %v421 = vadd.f32 %v252, %v420
      %v422 = vpop.f32.mrb[0].mxu0
      %v423 = vpop.f32.mrb[0].mxu0
      %v424 = vadd.f32 %v252, %v423
      %v425 = vpop.f32.mrb[0].mxu0
      %426 = vmatprep.mubr.bf16.mxu0 0
      %427 = vmatmul.mubr.bf16.gmra.mrb[0].mxu0 %v344
      %v428 = vpop.f32.mrb[0].mxu0
      %v429 = vadd.f32 %v252, %v428
      %v430 = vpop.f32.mrb[0].mxu0
      %v431 = vpop.f32.mrb[0].mxu0
      %v432 = vadd.f32 %v252, %v431
      %v433 = vpop.f32.mrb[0].mxu0
      %434 = vmatprep.mubr.bf16.mxu0 0
      %435 = vmatmul.mubr.bf16.gmra.mrb[0].mxu0 %v347
      %v436 = vpop.f32.mrb[0].mxu0
      %v437 = vadd.f32 %v252, %v436
      %v438 = vpop.f32.mrb[0].mxu0
      %v439 = vpop.f32.mrb[0].mxu0
      %v440 = vadd.f32 %v252, %v439
      %v441 = vpop.f32.mrb[0].mxu0
      %442 = vmatprep.mubr.bf16.mxu0 0
      %443 = vmatmul.mubr.bf16.gmra.mrb[0].mxu0 %v350
      %v444 = vpop.f32.mrb[0].mxu0
      %v445 = vadd.f32 %v252, %v444
      %v446 = vpop.f32.mrb[0].mxu0
      %v447 = vpop.f32.mrb[0].mxu0
      %v448 = vadd.f32 %v252, %v447
      %v449 = vpop.f32.mrb[0].mxu0
      %450 = vmatprep.mubr.bf16.mxu0 0
      %451 = vmatmul.mubr.bf16.gmra.mrb[0].mxu0 %v353
      %v452 = vpop.f32.mrb[0].mxu0
      %v453 = vadd.f32 %v252, %v452
      %v454 = vpop.f32.mrb[0].mxu0
      %v455 = vpop.f32.mrb[0].mxu0
      %v456 = vadd.f32 %v252, %v455
      %v457 = vpop.f32.mrb[0].mxu0
      %458 = vmatprep.mubr.bf16.mxu0 0
      %459 = vmatmul.mubr.bf16.gmra.mrb[0].mxu0 %v356
      %v460 = vpop.f32.mrb[0].mxu0
      %v461 = vadd.f32 %v252, %v460
      %v462 = vpop.f32.mrb[0].mxu0
      %v463 = vpop.f32.mrb[0].mxu0
      %v464 = vadd.f32 %v252, %v463
      %v465 = vpop.f32.mrb[0].mxu0
      %466 = vmatprep.mubr.bf16.mxu0 0
      %467 = vmatmul.mubr.bf16.gmra.mrb[0].mxu0 %v359
      %v468 = vpop.f32.mrb[0].mxu0
      %v469 = vadd.f32 %v252, %v468
      %v470 = vpop.f32.mrb[0].mxu0
      %v471 = vpop.f32.mrb[0].mxu0
      %v472 = vadd.f32 %v252, %v471
      %v473 = vpop.f32.mrb[0].mxu0
      %474 = vmatprep.mubr.bf16.mxu0 0
      %475 = vmatmul.mubr.bf16.gmra.mrb[0].mxu0 %v362
      %v476 = vpop.f32.mrb[0].mxu0
      %v477 = vadd.f32 %v252, %v476
      %v478 = vpop.f32.mrb[0].mxu0
      %v479 = vpop.f32.mrb[0].mxu0
      %v480 = vadd.f32 %v252, %v479
      %v481 = vpop.f32.mrb[0].mxu0
      %482 = vmatprep.mubr.bf16.mxu0 0
      %483 = vmatmul.mubr.bf16.gmra.mrb[0].mxu0 %v365
      %v484 = vpop.f32.mrb[0].mxu0
      %v485 = vadd.f32 %v252, %v484
      %v486 = vpop.f32.mrb[0].mxu0
      %v487 = vpop.f32.mrb[0].mxu0
      %v488 = vadd.f32 %v252, %v487
      %v489 = vpop.f32.mrb[0].mxu0
      %490 = vmatprep.mubr.bf16.mxu0 0
      %491 = vmatmul.mubr.bf16.gmra.mrb[0].mxu0 %v368
      %v492 = vpop.f32.mrb[0].mxu0
      %v493 = vadd.f32 %v252, %v492
      %v494 = vpop.f32.mrb[0].mxu0
      %v495 = vpop.f32.mrb[0].mxu0
      %v496 = vadd.f32 %v252, %v495
      %v497 = vpop.f32.mrb[0].mxu0
      %498 = vmatprep.mubr.bf16.mxu0 0
      %499 = vmatmul.mubr.bf16.gmra.mrb[0].mxu0 %v371
      %v500 = vpop.f32.mrb[0].mxu0
      %v501 = vadd.f32 %v252, %v500
      %v502 = vpop.f32.mrb[0].mxu0
      %v503 = vpop.f32.mrb[0].mxu0
      %v504 = vadd.f32 %v252, %v503
      %v505 = vpop.f32.mrb[0].mxu0
      %506 = vmatprep.mubr.bf16.mxu0 0
      %507 = vmatmul.mubr.bf16.gmra.mrb[0].mxu0 %v374
      %v508 = vpop.f32.mrb[0].mxu0
      %v509 = vadd.f32 %v252, %v508
      %v510 = vpop.f32.mrb[0].mxu0
      %v511 = vpop.f32.mrb[0].mxu0
      %v512 = vadd.f32 %v252, %v511
      %v513 = vpop.f32.mrb[0].mxu0
      %514 = vmatprep.mubr.bf16.mxu0 0
      %515 = vmatmul.mubr.bf16.gmra.mrb[0].mxu0 %v377
      %v516 = vpop.f32.mrb[0].mxu0
      %v517 = vadd.f32 %v252, %v516
      %v518 = vpop.f32.mrb[0].mxu0
      %v519 = vpop.f32.mrb[0].mxu0
      %v520 = vadd.f32 %v252, %v519
      %v521 = vpop.f32.mrb[0].mxu0
      %522 = vmatprep.mubr.bf16.mxu0 0
      %523 = vmatmul.mubr.bf16.gmra.mrb[0].mxu0 %v380
      %v524 = vpop.f32.mrb[0].mxu0
      %v525 = vadd.f32 %v252, %v524
      %v526 = vpop.f32.mrb[0].mxu0
      %v527 = vpop.f32.mrb[0].mxu0
      %v528 = vadd.f32 %v252, %v527
      %v529 = vpop.f32.mrb[0].mxu0
      %530 = vdwg.mxu0
      %v531 = vmax.f32 %v421, 0.0
      %v532 = vmax.f32 %v424, 0.0
      %v533 = vmax.f32 %v429, 0.0
      %v534 = vmax.f32 %v432, 0.0
      %v535 = vmax.f32 %v437, 0.0
      %v536 = vmax.f32 %v440, 0.0
      %v537 = vmax.f32 %v445, 0.0
      %v538 = vmax.f32 %v448, 0.0
      %v539 = vmax.f32 %v453, 0.0
      %v540 = vmax.f32 %v456, 0.0
      %v541 = vmax.f32 %v461, 0.0
      %v542 = vmax.f32 %v464, 0.0
      %v543 = vmax.f32 %v469, 0.0
      %v544 = vmax.f32 %v472, 0.0
      %v545 = vmax.f32 %v477, 0.0
      %v546 = vmax.f32 %v480, 0.0
      %v547 = vmax.f32 %v485, 0.0
      %v548 = vmax.f32 %v488, 0.0
      %v549 = vmax.f32 %v493, 0.0
      %v550 = vmax.f32 %v496, 0.0
      %v551 = vmax.f32 %v501, 0.0
      %v552 = vmax.f32 %v504, 0.0
      %v553 = vmax.f32 %v509, 0.0
      %v554 = vmax.f32 %v512, 0.0
      %v555 = vmax.f32 %v517, 0.0
      %v556 = vmax.f32 %v520, 0.0
      %v557 = vmax.f32 %v525, 0.0
      %v558 = vmax.f32 %v528, 0.0
      %v559 = vmax.f32 %v531, %v533
      %v560 = vmax.f32 %v532, %v534
      %v561 = vmax.f32 %v535, %v537
      %v562 = vmax.f32 %v536, %v538
      %v563 = vmax.f32 %v539, %v541
      %v564 = vmax.f32 %v540, %v542
      %v565 = vmax.f32 %v543, %v545
      %v566 = vmax.f32 %v544, %v546
      %v567 = vmax.f32 %v547, %v549
      %v568 = vmax.f32 %v548, %v550
      %v569 = vmax.f32 %v551, %v553
      %v570 = vmax.f32 %v552, %v554
      %v571 = vmax.f32 %v555, %v557
      %v572 = vmax.f32 %v556, %v558
      %573 = vst [vmem:[#allocation2] sm:$0xff] %v559
      %574 = vst [vmem:[#allocation2 + $0x8] sm:$0xff] %v560
      %575 = vst [vmem:[#allocation2 + $0x10] sm:$0xff] %v561
      %576 = vst [vmem:[#allocation2 + $0x18] sm:$0xff] %v562
      %577 = vst [vmem:[#allocation2 + $0x20] sm:$0xff] %v563
      %578 = vst [vmem:[#allocation2 + $0x28] sm:$0xff] %v564
      %579 = vst [vmem:[#allocation2 + $0x30] sm:$0xff] %v565
      %580 = vst [vmem:[#allocation2 + $0x38] sm:$0xff] %v566
      %581 = vst [vmem:[#allocation2 + $0x40] sm:$0xff] %v567
      %582 = vst [vmem:[#allocation2 + $0x48] sm:$0xff] %v568
      %583 = vst [vmem:[#allocation2 + $0x50] sm:$0xff] %v569
      %584 = vst [vmem:[#allocation2 + $0x58] sm:$0xff] %v570
      %585 = vst [vmem:[#allocation2 + $0x60] sm:$0xff] %v571
      %586 = vst [vmem:[#allocation2 + $0x68] sm:$0xff] %v572
      %v587 = vld [vmem:[#allocation2] ss:$2 sm:$0x7f]
      %s588 = scalar_lea.vmem [#allocation2], 16
      %v589 = vld [vmem:[%s588] ss:$2 sm:$0x7f]
      %s590 = scalar_lea.vmem [#allocation2], 32
      %v591 = vld [vmem:[%s590] ss:$2 sm:$0x7f]
      %s592 = scalar_lea.vmem [#allocation2], 48
      %v593 = vld [vmem:[%s592] ss:$2 sm:$0x7f]
      %s594 = scalar_lea.vmem [#allocation2], 64
      %v595 = vld [vmem:[%s594] ss:$2 sm:$0x7f]
      %s596 = scalar_lea.vmem [#allocation2], 80
      %v597 = vld [vmem:[%s596] ss:$2 sm:$0x7f]
      %s598 = scalar_lea.vmem [#allocation2], 96
      %v599 = vld [vmem:[%s598] ss:$2 sm:$0x7f]
      %s600 = scalar_lea.vmem [#allocation2], 1
      %v601 = vld [vmem:[%s600] ss:$2 sm:$0x7f]
      %s602 = scalar_lea.vmem [#allocation2], 17
      %v603 = vld [vmem:[%s602] ss:$2 sm:$0x7f]
      %s604 = scalar_lea.vmem [#allocation2], 33
      %v605 = vld [vmem:[%s604] ss:$2 sm:$0x7f]
      %s606 = scalar_lea.vmem [#allocation2], 49
      %v607 = vld [vmem:[%s606] ss:$2 sm:$0x7f]
      %s608 = scalar_lea.vmem [#allocation2], 65
      %v609 = vld [vmem:[%s608] ss:$2 sm:$0x7f]
      %s610 = scalar_lea.vmem [#allocation2], 81
      %v611 = vld [vmem:[%s610] ss:$2 sm:$0x7f]
      %s612 = scalar_lea.vmem [#allocation2], 97
      %v613 = vld [vmem:[%s612] ss:$2 sm:$0x7f]
      %v614 = vmax.f32 %v587, %v601
      %v615 = vmax.f32 %v589, %v603
      %v616 = vmax.f32 %v591, %v605
      %v617 = vmax.f32 %v593, %v607
      %v618 = vmax.f32 %v595, %v609
      %v619 = vmax.f32 %v597, %v611
      %v620 = vmax.f32 %v599, %v613
      %vm621 = vcmask 63488
      %622 = vst.msk [vmem:[%s211] sm:$0x7f] %vm621, %v614
      %623 = vst.msk [vmem:[%s211 + $0x8] sm:$0x7f] %vm621, %v615
      %624 = vst.msk [vmem:[%s211 + $0x10] sm:$0x7f] %vm621, %v616
      %625 = vst.msk [vmem:[%s211 + $0x18] sm:$0x7f] %vm621, %v617
      %626 = vst.msk [vmem:[%s211 + $0x20] sm:$0x7f] %vm621, %v618
      %627 = vst.msk [vmem:[%s211 + $0x28] sm:$0x7f] %vm621, %v619
      %628 = vst.msk [vmem:[%s211 + $0x30] sm:$0x7f] %vm621, %v620
      %s629 = smul.u32 7, %s19
      %p630 = scmp.lt.s32.totalorder %s18, 1
      %s631 = scalar_select %p630, %s18, 1
      %p632 = scmp.lt.s32.totalorder %s629, 6
      %s633 = scalar_select %p632, %s629, 6
      %s634 = smul.addr %s631, 7
      %s635 = sadd.s32 %s633, %s634
      %s636 = smul.addr %s635, 8
      %s637 = scalar_lea.vmem %s3, %s636
      // Predicated region
      $region33: #{conv_block_forward.1} parent=31 // pred_check
        %p638 = pneg %p116
      $region34: #{conv_block_forward.1} parent=31 // pred_check_branch
        %640 = sbr.rel (%p638) target = $region36
      $region35: #{conv_block_forward.1} parent=31 // pred_region
        %s641 = smul.u32 7, %s19
      $region36: #{conv_block_forward.1} parent=31 // pred_fallthru
        _
    $region32: #{conv_block_forward.1} parent=5 // pred_fallthru
      _
    %p642 = scmp.le.s32.totalorder 2, %s9
    // Predicated region
    $region37: #{conv_block_forward.1} parent=5 // pred_check
      %p643 = pneg %p642
    $region38: #{conv_block_forward.1} parent=5 // pred_check_branch
      %645 = sbr.rel (%p643) target = $region40
    $region39: #{conv_block_forward.1} parent=5 // pred_region
      %s646 = ssub.s32 %s9, 2
      // Predicated region
      $region41: #{conv_block_forward.1} parent=39 // pred_check
        %p647 = pneg %p122
      $region42: #{conv_block_forward.1} parent=39 // pred_check_branch
        %649 = sbr.rel (%p647) target = $region44
      $region43: #{conv_block_forward.1} parent=39 // pred_region
        %s650 = smul.u32 7, %s21
        %p651 = scmp.lt.s32.totalorder %s20, 1
        %s652 = scalar_select %p651, %s20, 1
        %p653 = scmp.lt.s32.totalorder %s650, 6
        %s654 = scalar_select %p653, %s650, 6
        %s655 = smul.addr %s652, 7
        %s656 = sadd.s32 %s654, %s655
        %s657 = smul.addr %s656, 8
        %s658 = scalar_lea.vmem %s3, %s657
      $region44: #{conv_block_forward.1} parent=39 // pred_fallthru
        _
    $region40: #{conv_block_forward.1} parent=5 // pred_fallthru
      _
  $region6: #{conv_block_forward.1} parent=0 // loop_footer
    %s13 = sadd.s32 1, %s9
  $region7: #{conv_block_forward.1} parent=0 // loop_footer_branch
    %8 = sbr.rel target = $region3
  $region8: #{conv_block_forward.1} parent=0 // loop_exit
    _

</llo_original>
